<compile_context>
chip_gen: v6e
topology: v6e:2x2x1
jax: 0.10.0
libtpu: 0.0.40
codegen_flags: <defaults>
</compile_context>

<pallas_src>
import functools

import jax
import jax.numpy as jnp
from jax.experimental import pallas as pl
from jax.experimental.pallas import tpu as pltpu


def _fp16_roundtrip(v):
    # value torch actually uses when an fp16 constant multiplies an fp32 tensor
    return float(jnp.float32(jnp.float16(v)))


def _round_up(a, b):
    return (a + b - 1) // b * b


def _cdiv(a, b):
    return (a + b - 1) // b


# ---------------------------------------------------------------------------
# One-time probe: does this jax/Mosaic build support stride-0 (sublane
# broadcast) dynamic-slice loads?  If yes, use them to keep the r/g/b row
# broadcasts on the load slot; otherwise fall back to implicit broadcasting
# (always supported).
# ---------------------------------------------------------------------------
_STRIDE0_OK = None


def _stride0_supported():
    global _STRIDE0_OK
    if _STRIDE0_OK is not None:
        return _STRIDE0_OK

    def probe_kernel(x_ref, o_ref):
        o_ref[...] = x_ref[pl.ds(0, 8, stride=0), :]

    try:
        x = jnp.arange(3 * 128, dtype=jnp.float32).reshape(3, 128)
        out = pl.pallas_call(
            probe_kernel,
            out_shape=jax.ShapeDtypeStruct((8, 128), jnp.float32),
        )(x)
        out = jax.block_until_ready(out)
        _STRIDE0_OK = bool(jnp.all(out == x[0:1, :]))
    except Exception:
        _STRIDE0_OK = False
    return _STRIDE0_OK


def g1012_kernel(x_ref, wb_ref, o_ref, *, threshold, factor_eff, bcast_load):
    """(3, T) pixel slab -> green mask + folded 1x1 conv+BN (VPU FMAs) -> SiLU -> (C2, T)."""
    c2 = o_ref.shape[0]
    if bcast_load:
        # stride-0 sublane-broadcast loads: each channel row replicated to C2 sublanes
        r = x_ref[pl.ds(0, c2, stride=0), :]            # (C2, T)
        g = x_ref[pl.ds(1, c2, stride=0), :]
        b = x_ref[pl.ds(2, c2, stride=0), :]
    else:
        x = x_ref[...]                                  # (3, T)
        r, g, b = x[0:1, :], x[1:2, :], x[2:3, :]       # (1, T); broadcast implicitly below

    # green-dominance mask; conv is linear in x, so mask * conv(x) == conv(mask * x)
    mask = jnp.where((g - r) > jnp.float32(threshold),
                     jnp.float32(factor_eff), jnp.float32(1.0))

    wb = wb_ref[...]                                    # (C2, 4): [w_r, w_g, w_b, bias] (BN folded)
    z = mask * (wb[:, 0:1] * r + wb[:, 1:2] * g + wb[:, 2:3] * b) + wb[:, 3:4]

    # SiLU; exp goes to the EUP.  (pl.reciprocal(..., approx=True) is cheaper if
    # ~1e-3 relative error is acceptable downstream.)
    o_ref[...] = (z * pl.reciprocal(1.0 + jnp.exp(-z))).astype(o_ref.dtype)


def g1012_forward(x_nchw, conv_w, gamma, beta, running_mean, running_var,
                  eps=1e-5, threshold=0.0392, factor=1.2,
                  tile=131072, out_dtype=jnp.float32):
    """x_nchw: (N, 3, H, W).  conv_w: (C2, 3, 1, 1).  Returns (N, C2, H, W) out_dtype.

    Inference (running-stats) BatchNorm semantics, folded into the conv.
    Pass out_dtype=jnp.bfloat16 to roughly halve HBM write traffic (v5e/v6e win)
    if downstream consumers tolerate it.
    """
    N, C1, H, W = x_nchw.shape
    assert C1 == 3, "G1012 uses channels 0/1/2 as r/g/b, so c1 must be 3"
    C2 = conv_w.shape[0]
    HW = H * W

    # Lane tile: multiple of 128.  Big tiles amortize the ~0.35us per-step cost;
    # shrink for small inputs so there are >= ~4 grid steps (v7x has 2 TCs).
    T = min(_round_up(HW, 128), _round_up(int(tile), 128))
    while N * _cdiv(HW, T) < 4 and T > 128:
        T = max(128, _round_up(_cdiv(T, 2), 128))
    n_tiles = _cdiv(HW, T)        # ragged tail handled by Pallas partial blocks

    x3d = x_nchw.reshape(N, C1, HW).astype(jnp.float32)   # free reshape, no transpose / pad

    # Fold inference BatchNorm into the 1x1-conv weight + bias; one (C2, 4) operand.
    scale = (gamma.astype(jnp.float32)
             / jnp.sqrt(running_var.astype(jnp.float32) + jnp.float32(eps)))        # (C2,)
    w_fold = conv_w.reshape(C2, C1).astype(jnp.float32) * scale[:, None]            # (C2, 3)
    b_fold = beta.astype(jnp.float32) - running_mean.astype(jnp.float32) * scale    # (C2,)
    wb = jnp.concatenate([w_fold, b_fold[:, None]], axis=1)                          # (C2, 4)

    kernel = functools.partial(
        g1012_kernel,
        threshold=float(threshold),
        factor_eff=_fp16_roundtrip(factor),
        bcast_load=_stride0_supported(),
    )

    out3d = pl.pallas_call(
        kernel,
        out_shape=jax.ShapeDtypeStruct((N, C2, HW), out_dtype),
        grid=(N, n_tiles),
        in_specs=[
            pl.BlockSpec((None, C1, T), lambda n, i: (n, 0, i)),   # (3, T) pixel slab
            pl.BlockSpec((C2, 4), lambda n, i: (0, 0)),            # folded weight+bias (invariant)
        ],
        out_specs=pl.BlockSpec((None, C2, T), lambda n, i: (n, 0, i)),
        compiler_params=pltpu.CompilerParams(
            dimension_semantics=("parallel", "parallel"),
            vmem_limit_bytes=48 * 1024 * 1024,
        ),
    )(x3d, wb)

    return out3d.reshape(N, C2, H, W)


if __name__ == "__main__":
    key = jax.random.PRNGKey(0)
    k_x, k_w, k_g, k_b, k_m, k_v = jax.random.split(key, 6)

    C1, C2 = 3, 8            # c1 must be 3 (r/g/b channels)

    conv_w = 0.1 * jax.random.normal(k_w, (C2, C1, 1, 1), dtype=jnp.float32)
    gamma = 0.5 + jax.random.uniform(k_g, (C2,), dtype=jnp.float32)
    beta = 0.1 * jax.random.normal(k_b, (C2,), dtype=jnp.float32)
    running_mean = 0.1 * jax.random.normal(k_m, (C2,), dtype=jnp.float32)
    running_var = 0.5 + jax.random.uniform(k_v, (C2,), dtype=jnp.float32)

    # pure-JAX reference with the torch module's semantics
    def ref(xx):
        thr = 0.0392
        fac = _fp16_roundtrip(1.2)
        r = xx[:, 0, :, :]
        g = xx[:, 1, :, :]
        mask = jnp.where((g - r) > thr, fac, 1.0)[:, None, :, :]
        y = xx * mask
        z = jnp.einsum("nchw,oc->nohw", y, conv_w.reshape(C2, C1))
        scale = gamma / jnp.sqrt(running_var + 1e-5)
        bias = beta - running_mean * scale
        z = z * scale[None, :, None, None] + bias[None, :, None, None]
        return z * jax.nn.sigmoid(z)

    def check(shape):
        n_, h_, w_ = shape
        kx = jax.random.fold_in(k_x, h_ * w_)
        xx = jax.random.normal(kx, (n_, C1, h_, w_), dtype=jnp.float32)
        o = g1012_forward(xx, conv_w, gamma, beta, running_mean, running_var)
        o = jax.block_until_ready(o)
        assert o.shape == (n_, C2, h_, w_)
        err = float(jnp.max(jnp.abs(o - ref(xx))))
        assert err < 1e-4, f"max abs err {err} for shape {shape}"

    check((2, 16, 16))   # tile-aligned path
    check((2, 10, 13))   # ragged tail: HW=130 is not a tile multiple (no pad/slice copies)

    print("KERNEL_OK")
</pallas_src>

<mosaic_0001>
module attributes {stable_mosaic.version = 11 : i64} {
  func.func @probe_kernel(%arg0: memref<3x128xf32, #tpu.memory_space<vmem>>, %arg1: memref<8x128xf32, #tpu.memory_space<vmem>>) attributes {dimension_semantics = [], scalar_prefetch = 0 : i64, scratch_operands = 0 : i64, tpu.core_type = #tpu.core_type<tc>} {
    %c0 = arith.constant 0 : index
    %c0_0 = arith.constant 0 : index
    %0 = tpu.strided_load %arg0[%c0, %c0_0] {strides = array<i32: 0, 1>} : memref<3x128xf32, #tpu.memory_space<vmem>>, vector<8x128xf32>
    %c0_1 = arith.constant 0 : index
    %c0_2 = arith.constant 0 : index
    %1 = vector.load %arg1[%c0_1, %c0_2] : memref<8x128xf32, #tpu.memory_space<vmem>>, vector<8x128xf32>
    tpu.vector_store %arg1[%c0_1, %c0_2], %0 {strides = array<i32>} : memref<8x128xf32, #tpu.memory_space<vmem>>, vector<8x128xf32>,
    return
  }
}

module attributes {stable_mosaic.version = 11 : i64} {
  func.func @g1012_kernel(%arg0: i32, %arg1: i32, %arg2: memref<1x3x128xf32, #tpu.memory_space<vmem>>, %arg3: memref<8x4xf32, #tpu.memory_space<vmem>>, %arg4: memref<1x8x128xf32, #tpu.memory_space<vmem>>) attributes {dimension_semantics = [#tpu.dimension_semantics<parallel>, #tpu.dimension_semantics<parallel>], iteration_bounds = array<i64: 2, 2>, scalar_prefetch = 0 : i64, scratch_operands = 0 : i64, tpu.core_type = #tpu.core_type<tc>, window_params = [{transform_indices = @transform_0, window_bounds = array<i64: 1, 3, 128>}, {pipeline_mode = #tpu.pipeline_mode<synchronous>, transform_indices = @transform_1, window_bounds = array<i64: 8, 4>}, {transform_indices = @transform_2, window_bounds = array<i64: 1, 8, 128>}]} {
    %c0 = arith.constant 0 : index
    %c0_0 = arith.constant 0 : index
    %c0_1 = arith.constant 0 : index
    %0 = vector.load %arg2[%c0, %c0_0, %c0_1] : memref<1x3x128xf32, #tpu.memory_space<vmem>>, vector<1x3x128xf32>
    %1 = vector.shape_cast %0 : vector<1x3x128xf32> to vector<3x128xf32>
    %2 = vector.extract_strided_slice %1 {offsets = [0, 0], sizes = [1, 128], strides = [1, 1]} : vector<3x128xf32> to vector<1x128xf32>
    %3 = vector.extract_strided_slice %1 {offsets = [1, 0], sizes = [1, 128], strides = [1, 1]} : vector<3x128xf32> to vector<1x128xf32>
    %4 = vector.extract_strided_slice %1 {offsets = [2, 0], sizes = [1, 128], strides = [1, 1]} : vector<3x128xf32> to vector<1x128xf32>
    %5 = arith.subf %3, %2 : vector<1x128xf32>
    %cst = arith.constant 3.920000e-02 : f32
    %6 = vector.broadcast %cst : f32 to vector<1x128xf32>
    %7 = arith.cmpf ogt, %5, %6 : vector<1x128xf32>
    %cst_2 = arith.constant 1.20019531 : f32
    %cst_3 = arith.constant 1.000000e+00 : f32
    %8 = vector.broadcast %cst_2 : f32 to vector<1x128xf32>
    %9 = vector.broadcast %cst_3 : f32 to vector<1x128xf32>
    %10 = arith.select %7, %8, %9 : vector<1x128xi1>, vector<1x128xf32>
    %c0_4 = arith.constant 0 : index
    %c0_5 = arith.constant 0 : index
    %11 = vector.load %arg3[%c0_4, %c0_5] : memref<8x4xf32, #tpu.memory_space<vmem>>, vector<8x4xf32>
    %12 = vector.extract_strided_slice %11 {offsets = [0, 0], sizes = [8, 1], strides = [1, 1]} : vector<8x4xf32> to vector<8x1xf32>
    %13 = vector.broadcast %12 : vector<8x1xf32> to vector<8x128xf32>
    %14 = vector.broadcast %2 : vector<1x128xf32> to vector<8x128xf32>
    %15 = arith.mulf %13, %14 : vector<8x128xf32>
    %16 = vector.extract_strided_slice %11 {offsets = [0, 1], sizes = [8, 1], strides = [1, 1]} : vector<8x4xf32> to vector<8x1xf32>
    %17 = vector.broadcast %16 : vector<8x1xf32> to vector<8x128xf32>
    %18 = vector.broadcast %3 : vector<1x128xf32> to vector<8x128xf32>
    %19 = arith.mulf %17, %18 : vector<8x128xf32>
    %20 = arith.addf %15, %19 : vector<8x128xf32>
    %21 = vector.extract_strided_slice %11 {offsets = [0, 2], sizes = [8, 1], strides = [1, 1]} : vector<8x4xf32> to vector<8x1xf32>
    %22 = vector.broadcast %21 : vector<8x1xf32> to vector<8x128xf32>
    %23 = vector.broadcast %4 : vector<1x128xf32> to vector<8x128xf32>
    %24 = arith.mulf %22, %23 : vector<8x128xf32>
    %25 = arith.addf %20, %24 : vector<8x128xf32>
    %26 = vector.broadcast %10 : vector<1x128xf32> to vector<8x128xf32>
    %27 = arith.mulf %26, %25 : vector<8x128xf32>
    %28 = vector.extract_strided_slice %11 {offsets = [0, 3], sizes = [8, 1], strides = [1, 1]} : vector<8x4xf32> to vector<8x1xf32>
    %29 = vector.broadcast %28 : vector<8x1xf32> to vector<8x128xf32>
    %30 = arith.addf %27, %29 : vector<8x128xf32>
    %cst_6 = arith.constant 0.000000e+00 : f32
    %31 = vector.broadcast %cst_6 : f32 to vector<8x128xf32>
    %32 = arith.subf %31, %30 : vector<8x128xf32>
    %33 = math.exp %32 : vector<8x128xf32>
    %cst_7 = arith.constant 1.000000e+00 : f32
    %34 = vector.broadcast %cst_7 : f32 to vector<8x128xf32>
    %35 = arith.addf %34, %33 : vector<8x128xf32>
    %36 = tpu.reciprocal %35 : vector<8x128xf32> -> vector<8x128xf32>
    %37 = arith.mulf %30, %36 : vector<8x128xf32>
    %c0_8 = arith.constant 0 : index
    %c0_9 = arith.constant 0 : index
    %c0_10 = arith.constant 0 : index
    %38 = vector.load %arg4[%c0_8, %c0_9, %c0_10] : memref<1x8x128xf32, #tpu.memory_space<vmem>>, vector<1x8x128xf32>
    %39 = vector.shape_cast %38 : vector<1x8x128xf32> to vector<8x128xf32>
    %40 = vector.shape_cast %37 : vector<8x128xf32> to vector<1x8x128xf32>
    tpu.vector_store %arg4[%c0_8, %c0_9, %c0_10], %40 {strides = array<i32>} : memref<1x8x128xf32, #tpu.memory_space<vmem>>, vector<1x8x128xf32>,
    return
  }
  func.func @transform_0(%arg0: i32, %arg1: i32) -> (i32, i32, i32) {
    %c0_i32 = arith.constant 0 : i32
    %c0_i32_0 = arith.constant 0 : i32
    return %arg0, %c0_i32, %arg1 : i32, i32, i32
  }
  func.func @transform_1(%arg0: i32, %arg1: i32) -> (i32, i32) {
    %c0_i32 = arith.constant 0 : i32
    %c0_i32_0 = arith.constant 0 : i32
    %c0_i32_1 = arith.constant 0 : i32
    return %c0_i32, %c0_i32_0 : i32, i32
  }
  func.func @transform_2(%arg0: i32, %arg1: i32) -> (i32, i32, i32) {
    %c0_i32 = arith.constant 0 : i32
    %c0_i32_0 = arith.constant 0 : i32
    return %arg0, %c0_i32, %arg1 : i32, i32, i32
  }
}

</mosaic_0001>

<llo_original>
// kernel: tpu_custom_call.1
$region0: #{tpu_custom_call.1}
  #allocation0 [shape = 'u32[]', space=smem, size = 0x4, offset = 0x4, fixed_abs, tag = 'smem constant byte address 0x4 - core index']
  #allocation1 [shape = 'u32[144,128]{1,0:T(1,128)}', space=vmem, size = 0x12000, scoped, tag = 'internal scratch']
  %s0 = inlined_call_operand.hbm [shape: f32[3,128], index: 0, kind: input, shape index: {}]
  %s1 = inlined_call_operand.hbm [shape: f32[8,128], index: 1, kind: output, shape index: {}]
  %s2 = sld [smem:[#allocation0]]
  $region18: #{tpu_custom_call.1} parent=0
    _
  %s4 = ssub.s32 1, %s2
  %s5 = scalar_select 0, %s4, %s2
  $region1: #{tpu_custom_call.1} parent=0
    #allocation2 [shape = 'u8[2048]{0}', space=vmem, size = 0x800, scoped, tag = 'input window, operand 0, single buffered']
    #allocation3 [shape = 's32[1]{0}', space=sflag, size = 0x4, scoped, tag = 'scoped memory for tpu_custom_call.1']
    #allocation4 [shape = 's32[1]{0}', space=sflag, size = 0x4, scoped, tag = 'scoped memory for tpu_custom_call.1']
    #allocation5 [shape = 'u8[4096]{0}', space=vmem, size = 0x1000, scoped, tag = 'output window, operand 0, single buffered']
    %6 = vsyncpa [#allocation3], 0
    %7 = vsyncpa [#allocation4], 0
    // Predicated region
    $region2: #{tpu_custom_call.1} parent=1 // pred_check
      _
    $region3: #{tpu_custom_call.1} parent=1 // pred_check_branch
      %9 = sbr.rel (0) target = $region5
    $region4: #{tpu_custom_call.1} parent=1 // pred_region
      %s11 = ssub.s32 64, 64
      %12 = vsyncadd [#allocation3], %s11
      %s14 = sshll.u32 [#allocation2], 4
      %s15 = int_to_ptr.vmem [resolvable:$true] %s14
      %17 = dma.hbm_to_vmem [thread:$0]  %s0, 64, %s15, [#allocation3]
    $region5: #{tpu_custom_call.1} parent=1 // pred_fallthru
      _
    // Predicated region
    $region6: #{tpu_custom_call.1} parent=1 // pred_check
      _
    $region7: #{tpu_custom_call.1} parent=1 // pred_check_branch
      %19 = sbr.rel (0) target = $region9
    $region8: #{tpu_custom_call.1} parent=1 // pred_region
      %20 = dma.done [#allocation3], 64
    $region9: #{tpu_custom_call.1} parent=1 // pred_fallthru
      _
    %v21 = vld [vmem:[#allocation2] ss:$0 sm:$0xff]
    %22 = vst [vmem:[#allocation5] sm:$0xff] %v21
    // Predicated region
    $region10: #{tpu_custom_call.1} parent=1 // pred_check
      _
    $region11: #{tpu_custom_call.1} parent=1 // pred_check_branch
      %24 = sbr.rel (0) target = $region13
    $region12: #{tpu_custom_call.1} parent=1 // pred_region
      %s26 = ssub.s32 128, 128
      %27 = vsyncadd [#allocation4], %s26
      %s29 = sshll.u32 [#allocation5], 4
      %s30 = int_to_ptr.vmem [resolvable:$true] %s29
      %32 = dma.vmem_to_hbm [thread:$0]  %s30, 128, %s1, [#allocation4]
    $region13: #{tpu_custom_call.1} parent=1 // pred_fallthru
      _
    // Predicated region
    $region14: #{tpu_custom_call.1} parent=1 // pred_check
      _
    $region15: #{tpu_custom_call.1} parent=1 // pred_check_branch
      %34 = sbr.rel (0) target = $region17
    $region16: #{tpu_custom_call.1} parent=1 // pred_region
      %35 = dma.done [#allocation4], 128
    $region17: #{tpu_custom_call.1} parent=1 // pred_fallthru
      _
    %36 = vsyncpa [#allocation3], 1
    %37 = vsyncpa [#allocation4], 1

// kernel: tpu_custom_call.1
$region0: #{tpu_custom_call.1}
  #allocation0 [shape = 'u32[]', space=smem, size = 0x4, offset = 0x4, fixed_abs, tag = 'smem constant byte address 0x4 - core index']
  #allocation1 [shape = 'u32[144,128]{1,0:T(1,128)}', space=vmem, size = 0x12000, scoped, tag = 'internal scratch']
  %s0 = inlined_call_operand.vmem [shape: f32[2,3,256], index: 0, kind: input, shape index: {}]
  %s1 = inlined_call_operand.vmem [shape: f32[8,4], index: 1, kind: input, shape index: {}]
  %s2 = inlined_call_operand.hbm [shape: f32[2,8,256], index: 2, kind: output, shape index: {}]
  %s3 = sld [smem:[#allocation0]]
  $region41: #{tpu_custom_call.1} parent=0
    _
  %s5 = ssub.s32 1, %s3
  %s6 = scalar_select 0, %s5, %s3
  $region1: #{tpu_custom_call.1} parent=0
    #allocation2 [shape = 'u8[8192]{0}', space=vmem, size = 0x2000, scoped, tag = 'output window, operand 0']
    #allocation3 [shape = 's32[2]{0}', space=sflag, size = 0x8, scoped, tag = 'scoped memory for tpu_custom_call.1']
    %7 = vsyncpa [#allocation3], 0
    %s8 = scalar_lea.sflag [#allocation3], 1
    %9 = vsyncpa %s8, 0
    loop: start=0, step=1, limit=6
    $region2: #{tpu_custom_call.1} parent=1 // loop_pre_header
      _
    $region3: #{tpu_custom_call.1} parent=1 // loop_header
      %s11 = sphi 0, %s15
      %p12 = scmp.ge.s32.totalorder %s11, 6
      %s18 = sphi 0, %s30
      %s19 = sphi 0, %s26
      %s20 = sphi 0, %s18
      %s21 = sphi 0, %s19
      %s22 = sphi 0, %s20
      %s23 = sphi 0, %s21
      %s35 = sphi 0, %s37
      %s38 = sphi 0, %s35
      %s39 = sphi 0, %s38
      %s55 = sphi 0, %s39
      %s59 = sphi 0, %s59
      %s61 = sphi 0, %s59
      %s62 = sphi 0, %s61
      %s76 = sphi 0, %s62
      %s84 = sphi 0, %s86
      %s87 = sphi 0, %s84
      %s88 = sphi 0, %s87
      %s104 = sphi 0, %s88
    $region4: #{tpu_custom_call.1} parent=1 // loop_header_branch
      %14 = sbr.rel (%p12) target = $region8
    $region5: #{tpu_custom_call.1} parent=1 // loop_body
      %s16 = ssub.s32 %s11, 1
      %s17 = ssub.s32 %s11, 2
      %s24 = sadd.s32 1, %s19
      %p25 = scmp.ge.s32.totalorder %s24, 2
      %s26 = scalar_select %p25, 0, %s24
      %s27 = sadd.s32 1, %s18
      %s28 = scalar_select %p25, %s27, %s18
      %p29 = scmp.ge.s32.totalorder %s28, 2
      %s30 = scalar_select %p29, 0, %s28
      %s31 = ssub.s32 %s18, %s30
      %s32 = ssub.s32 %s19, %s26
      %s33 = sor.u32 %s31, %s32
      %p34 = scmp.eq.s32.totalorder %s33, 0
      %s36 = sadd.s32 %s35, 1
      %s37 = scalar_select %p34, %s35, %s36
      %p40 = pneg %p34
      %p41 = scmp.eq.s32.totalorder %s11, 3
      %p42 = por %p40, %p41
      %p43 = scmp.ne.s32.totalorder %s35, %s38
      %p44 = scmp.eq.s32.totalorder %s11, 0
      %p45 = por %p43, %p44
      %p46 = scmp.ne.s32.totalorder %s35, %s38
      %p47 = scmp.eq.s32.totalorder %s16, 3
      %p48 = por %p46, %p47
      %p49 = scmp.ne.s32.totalorder %s38, %s39
      %p50 = scmp.eq.s32.totalorder %s16, 0
      %p51 = por %p49, %p50
      %p52 = scmp.ne.s32.totalorder %s38, %s39
      %p53 = scmp.eq.s32.totalorder %s17, 3
      %p54 = por %p52, %p53
      %p56 = scmp.ne.s32.totalorder %s39, %s55
      %p57 = scmp.eq.s32.totalorder %s17, 0
      %p58 = por %p56, %p57
      %s60 = sadd.s32 %s59, 1
      %p63 = scmp.eq.s32.totalorder %s11, 3
      %p64 = scmp.ne.s32.totalorder %s59, %s61
      %p65 = scmp.eq.s32.totalorder %s11, 0
      %p66 = por %p64, %p65
      %p67 = scmp.ne.s32.totalorder %s59, %s61
      %p68 = scmp.eq.s32.totalorder %s16, 3
      %p69 = por %p67, %p68
      %p70 = scmp.ne.s32.totalorder %s61, %s62
      %p71 = scmp.eq.s32.totalorder %s16, 0
      %p72 = por %p70, %p71
      %p73 = scmp.ne.s32.totalorder %s61, %s62
      %p74 = scmp.eq.s32.totalorder %s17, 3
      %p75 = por %p73, %p74
      %p77 = scmp.ne.s32.totalorder %s62, %s76
      %p78 = scmp.eq.s32.totalorder %s17, 0
      %p79 = por %p77, %p78
      %s80 = ssub.s32 %s18, %s30
      %s81 = ssub.s32 %s19, %s26
      %s82 = sor.u32 %s80, %s81
      %p83 = scmp.eq.s32.totalorder %s82, 0
      %s85 = sadd.s32 %s84, 1
      %s86 = scalar_select %p83, %s84, %s85
      %p89 = pneg %p83
      %p90 = scmp.eq.s32.totalorder %s11, 3
      %p91 = por %p89, %p90
      %p92 = scmp.ne.s32.totalorder %s84, %s87
      %p93 = scmp.eq.s32.totalorder %s11, 0
      %p94 = por %p92, %p93
      %p95 = scmp.ne.s32.totalorder %s84, %s87
      %p96 = scmp.eq.s32.totalorder %s16, 3
      %p97 = por %p95, %p96
      %p98 = scmp.ne.s32.totalorder %s87, %s88
      %p99 = scmp.eq.s32.totalorder %s16, 0
      %p100 = por %p98, %p99
      %p101 = scmp.ne.s32.totalorder %s87, %s88
      %p102 = scmp.eq.s32.totalorder %s17, 3
      %p103 = por %p101, %p102
      %p105 = scmp.ne.s32.totalorder %s88, %s104
      %p106 = scmp.eq.s32.totalorder %s17, 0
      %p107 = por %p105, %p106
      %p108 = scmp.le.s32.totalorder 1, %s11
      %p109 = scmp.lt.s32.totalorder %s11, 5
      %p110 = pnand %p108, %p109
      %p111 = pneg %p110
      // Predicated region
      $region9: #{tpu_custom_call.1} parent=5 // pred_check
        _
      $region10: #{tpu_custom_call.1} parent=5 // pred_check_branch
        %113 = sbr.rel (%p110) target = $region12
      $region11: #{tpu_custom_call.1} parent=5 // pred_region
        %s114 = ssub.s32 %s11, 1
        // Predicated region
        $region13: #{tpu_custom_call.1} parent=11 // pred_check
          %p115 = pneg %p72
        $region14: #{tpu_custom_call.1} parent=11 // pred_check_branch
          %117 = sbr.rel (%p115) target = $region16
        $region15: #{tpu_custom_call.1} parent=11 // pred_region
          _
        $region16: #{tpu_custom_call.1} parent=11 // pred_fallthru
          _
      $region12: #{tpu_custom_call.1} parent=5 // pred_fallthru
        _
      %p118 = scmp.lt.s32.totalorder %s11, 4
      // Predicated region
      $region17: #{tpu_custom_call.1} parent=5 // pred_check
        %p119 = pneg %p118
      $region18: #{tpu_custom_call.1} parent=5 // pred_check_branch
        %121 = sbr.rel (%p119) target = $region20
      $region19: #{tpu_custom_call.1} parent=5 // pred_region
        // Predicated region
        $region21: #{tpu_custom_call.1} parent=19 // pred_check
          %p122 = pneg %p45
        $region22: #{tpu_custom_call.1} parent=19 // pred_check_branch
          %124 = sbr.rel (%p122) target = $region24
        $region23: #{tpu_custom_call.1} parent=19 // pred_region
          %p125 = scmp.lt.s32.totalorder %s18, 1
          %s126 = scalar_select %p125, %s18, 1
          %p127 = scmp.lt.s32.totalorder %s19, 1
          %s128 = scalar_select %p127, %s19, 1
          %s129 = smul.addr %s126, 2
          %s130 = sadd.s32 %s128, %s129
          %s131 = smul.addr %s130, 4
          %s132 = scalar_lea.vmem %s0, %s131
        $region24: #{tpu_custom_call.1} parent=19 // pred_fallthru
          _
      $region20: #{tpu_custom_call.1} parent=5 // pred_fallthru
        _
      %p133 = scmp.le.s32.totalorder 1, %s11
      %p134 = scmp.lt.s32.totalorder %s11, 5
      %p135 = pnand %p133, %p134
      %p136 = pneg %p135
      // Predicated region
      $region25: #{tpu_custom_call.1} parent=5 // pred_check
        _
      $region26: #{tpu_custom_call.1} parent=5 // pred_check_branch
        %138 = sbr.rel (%p135) target = $region28
      $region27: #{tpu_custom_call.1} parent=5 // pred_region
        %s139 = ssub.s32 %s11, 1
        %p140 = scmp.lt.s32.totalorder %s20, 1
        %s141 = scalar_select %p140, %s20, 1
        %p142 = scmp.lt.s32.totalorder %s21, 1
        %s143 = scalar_select %p142, %s21, 1
        %s144 = smul.addr %s141, 2
        %s145 = sadd.s32 %s143, %s144
        %s146 = smul.addr %s145, 4
        %s147 = scalar_lea.vmem %s0, %s146
        %p148 = pneg %p51
        %p149 = pneg %p48
        %p150 = pneg %p72
        %p151 = pneg %p69
        %p152 = pneg %p100
        %p153 = pneg %p97
        %s154 = sand.u32 %s87, 1
        %s155 = scalar_lea.sflag [#allocation3], %s154
        %s156 = sand.u32 %s87, 1
        %s157 = smul.addr %s156, 8
        %s158 = scalar_lea.vmem [#allocation2], %s157
        %p159 = scmp.lt.s32.totalorder %s20, 1
        %s160 = scalar_select %p159, %s20, 1
        %p161 = scmp.lt.s32.totalorder %s21, 1
        %s162 = scalar_select %p161, %s21, 1
        %s163 = smul.addr %s160, 2
        %s164 = sadd.s32 %s162, %s163
        %s165 = smul.addr %s164, 4
        %s166 = scalar_lea.vmem %s0, %s165
        %v167 = vld [vmem:[%s166] sm:$0x7]
        %v169 = vrot.slane %v167, 7
        %v171 = vsub.f32 %v167, %v169
        %vm172 = vcmp.gt.f32.partialorder %v171, 0.0392
        %v173 = vsel %vm172, 1.2001953, 1.0
        %v174 = vld [vmem:[%s1] sm:$0xff]
        %176 = vset.pattern.permute.xlu0 0
        %177 = vperm.xlu0 %176, %v174
        %v178 = vpop.permute.xlu0 %177
        %v180 = vlaneseq
        %v181 = vshrl.u32 %v180, 7
        %v182 = vsub.s32 0, %v181
        %v183 = vrot.slane %v167, %v182
        %v184 = vmul.f32 %v178, %v183
        %185 = vset.pattern.permute.xlu0 1
        %186 = vperm.xlu0 %185, %v174
        %v187 = vpop.permute.xlu0 %186
        %v189 = vlaneseq
        %v190 = vshrl.u32 %v189, 7
        %v191 = vsub.s32 1, %v190
        %v192 = vrot.slane %v167, %v191
        %v193 = vmul.f32 %v187, %v192
        %v194 = vadd.f32 %v184, %v193
        %195 = vset.pattern.permute.xlu0 2
        %196 = vperm.xlu0 %195, %v174
        %v197 = vpop.permute.xlu0 %196
        %v199 = vlaneseq
        %v200 = vshrl.u32 %v199, 7
        %v201 = vsub.s32 2, %v200
        %v202 = vrot.slane %v167, %v201
        %v203 = vmul.f32 %v197, %v202
        %v204 = vadd.f32 %v194, %v203
        %v205 = vlaneseq
        %v206 = vshrl.u32 %v205, 7
        %v207 = vsub.s32 1, %v206
        %v208 = vrot.slane %v173, %v207
        %v209 = vmul.f32 %v208, %v204
        %210 = vset.pattern.permute.xlu0 3
        %211 = vperm.xlu0 %210, %v174
        %v212 = vpop.permute.xlu0 %211
        %v214 = vadd.f32 %v209, %v212
        %v215 = vsub.f32 0.0, %v214
        %v216 = vmul.f32 %v215, 1.442695
        %v217 = vpow.pop %v216
        %v218 = vadd.f32 %v217, 1.0
        %v219 = vrcp.pop %v218
        %v220 = vmul.f32 %v214, %v219
        %221 = vst [vmem:[%s158] sm:$0xff] %v220
        %s222 = sand.u32 %s87, 1
        %s223 = scalar_lea.sflag [#allocation3], %s222
        %s224 = sand.u32 %s87, 1
        %s225 = smul.addr %s224, 8
        %s226 = scalar_lea.vmem [#allocation2], %s225
        // Predicated region
        $region29: #{tpu_custom_call.1} parent=27 // pred_check
          %p227 = pneg %p97
        $region30: #{tpu_custom_call.1} parent=27 // pred_check_branch
          %229 = sbr.rel (%p227) target = $region32
        $region31: #{tpu_custom_call.1} parent=27 // pred_region
          %s231 = ssub.s32 128, 128
          %232 = vsyncadd %s223, %s231
          %s233 = smul.addr %s20, 2
          %s234 = sadd.s32 %s21, %s233
          %s235 = smul.addr %s234, 128
          %s236 = scalar_lea.hbm %s2, %s235
          %s238 = sshll.u32 %s226, 4
          %s239 = int_to_ptr.vmem [resolvable:$true] %s238
          %241 = dma.vmem_to_hbm [thread:$0]  %s239, 128, %s236, %s223
        $region32: #{tpu_custom_call.1} parent=27 // pred_fallthru
          _
      $region28: #{tpu_custom_call.1} parent=5 // pred_fallthru
        _
      %p242 = scmp.le.s32.totalorder 2, %s11
      // Predicated region
      $region33: #{tpu_custom_call.1} parent=5 // pred_check
        %p243 = pneg %p242
      $region34: #{tpu_custom_call.1} parent=5 // pred_check_branch
        %245 = sbr.rel (%p243) target = $region36
      $region35: #{tpu_custom_call.1} parent=5 // pred_region
        %s246 = ssub.s32 %s11, 2
        // Predicated region
        $region37: #{tpu_custom_call.1} parent=35 // pred_check
          %p247 = pneg %p103
        $region38: #{tpu_custom_call.1} parent=35 // pred_check_branch
          %249 = sbr.rel (%p247) target = $region40
        $region39: #{tpu_custom_call.1} parent=35 // pred_region
          %s250 = sand.u32 %s88, 1
          %s251 = scalar_lea.sflag [#allocation3], %s250
          %s252 = sand.u32 %s88, 1
          %s253 = smul.addr %s252, 8
          %s254 = scalar_lea.vmem [#allocation2], %s253
          %255 = dma.done %s251, 128
        $region40: #{tpu_custom_call.1} parent=35 // pred_fallthru
          _
      $region36: #{tpu_custom_call.1} parent=5 // pred_fallthru
        _
    $region6: #{tpu_custom_call.1} parent=1 // loop_footer
      %s15 = sadd.s32 1, %s11
    $region7: #{tpu_custom_call.1} parent=1 // loop_footer_branch
      %10 = sbr.rel target = $region3
    $region8: #{tpu_custom_call.1} parent=1 // loop_exit
      _
    %256 = vsyncpa [#allocation3], 1
    %s257 = scalar_lea.sflag [#allocation3], 1
    %258 = vsyncpa %s257, 1

</llo_original>
